<compile_context>
chip_gen: v7x
topology: tpu7x:2x2x1
jax: 0.10.0
libtpu: 0.0.40
codegen_flags: <defaults>
</compile_context>

<pallas_src>
import functools

import jax
import jax.numpy as jnp
from jax.experimental import pallas as pl
from jax.experimental.pallas import tpu as pltpu


# ---------------------------------------------------------------------------
# Kernel 1: hoisted input projection (one big MXU matmul, both directions
# fused into the N dimension: N = 8H, good for the 256-wide MXU on v6e/v7x).
# ---------------------------------------------------------------------------
def _pregate_kernel(x_ref, w_ref, b_ref, o_ref):
    o_ref[...] = (
        jnp.dot(x_ref[...], w_ref[...], preferred_element_type=jnp.float32)
        + b_ref[...]
    )


def input_projection(x_flat, w_cat, b_cat):
    """x_flat: (T*B, E) bf16, w_cat: (E, 8H) bf16, b_cat: (1, 8H) f32.
    Returns pre-gates (T*B, 8H) f32."""
    R, E = x_flat.shape
    G8 = w_cat.shape[1]

    # Tile the M dimension; at these demo sizes a single block suffices.
    row_tile = R
    for cand in (512, 256, 128):
        if R > cand and R % cand == 0:
            row_tile = cand
            break
    n_rows = R // row_tile

    return pl.pallas_call(
        _pregate_kernel,
        out_shape=jax.ShapeDtypeStruct((R, G8), jnp.float32),
        grid_spec=pltpu.PrefetchScalarGridSpec(
            num_scalar_prefetch=0,
            grid=(n_rows,),
            in_specs=[
                pl.BlockSpec((row_tile, E), lambda i: (i, 0)),
                pl.BlockSpec((E, G8), lambda i: (0, 0)),   # weights resident
                pl.BlockSpec((1, G8), lambda i: (0, 0)),
            ],
            out_specs=pl.BlockSpec((row_tile, G8), lambda i: (i, 0)),
        ),
        compiler_params=pltpu.CompilerParams(
            dimension_semantics=("parallel",),
            vmem_limit_bytes=32 * 1024 * 1024,
        ),
    )(x_flat, w_cat, b_cat)


# ---------------------------------------------------------------------------
# Kernel 2: bidirectional LSTM recurrence over pre-gates.
# grid = (2, T // Tc): axis 0 = direction (parallel -> 2 TCs on v7x),
#                      axis 1 = time chunk (sequential; scratch carries h, c).
# Only the final hidden state of each direction is emitted (that is all the
# PyTorch forward uses: h[-2], h[-1]).
# ---------------------------------------------------------------------------
def _make_bilstm_kernel(time_chunk, hidden):
    Tc, H = time_chunk, hidden

    def kernel(pg_ref, whh_ref, hout_ref, h_sc, c_sc):
        d = pl.program_id(0)          # direction: 0 = forward, 1 = backward
        c = pl.program_id(1)          # time chunk
        nc = pl.num_programs(1)

        @pl.when(c == 0)
        def _init():
            h_sc[...] = jnp.zeros_like(h_sc)
            c_sc[...] = jnp.zeros_like(c_sc)

        whh = whh_ref[0]              # (H, 4H) bf16, VMEM-resident

        def step(j, carry):
            h, cc = carry
            # position inside the chunk: fwd -> j, bwd -> Tc-1-j
            jj = j + d * (Tc - 1 - 2 * j)
            pg = pg_ref[jj]           # (B, 4H) f32 pre-gate for this step
            gates = pg + jnp.dot(h.astype(whh.dtype), whh,
                                 preferred_element_type=jnp.float32)
            # TODO(synk): with H < 128 the gate slices are not lane-aligned;
            # pad H to a multiple of 128 in production to avoid masked lanes.
            i_g = jax.nn.sigmoid(gates[:, 0 * H:1 * H])
            f_g = jax.nn.sigmoid(gates[:, 1 * H:2 * H])
            g_g = jnp.tanh(gates[:, 2 * H:3 * H])
            o_g = jax.nn.sigmoid(gates[:, 3 * H:4 * H])
            c_new = f_g * cc + i_g * g_g
            h_new = o_g * jnp.tanh(c_new)
            return h_new, c_new

        h, cc = jax.lax.fori_loop(0, Tc, step, (h_sc[...], c_sc[...]),
                                  unroll=True)
        h_sc[...] = h
        c_sc[...] = cc

        @pl.when(c == nc - 1)
        def _emit():
            hout_ref[0] = h

    return kernel


def bilstm_final_hidden(pregates, whh, *, hidden, time_chunk):
    """pregates: (T, B, 8H) f32 (cols [0:4H]=fwd, [4H:8H]=bwd),
    whh: (2, H, 4H) bf16.  Returns (2, B, H) f32: [fwd_final, bwd_final]."""
    T, B, _ = pregates.shape
    H = hidden
    assert T % time_chunk == 0, "T must be a multiple of time_chunk"
    Tc = time_chunk
    nc = T // Tc

    # forward reads time-chunk c, backward reads time-chunk nc-1-c (and walks
    # it in reverse inside the kernel); column block d picks the direction.
    def pg_map(d, c):
        return (c + d * (nc - 1 - 2 * c), 0, d)

    return pl.pallas_call(
        _make_bilstm_kernel(Tc, H),
        out_shape=jax.ShapeDtypeStruct((2, B, H), jnp.float32),
        grid_spec=pltpu.PrefetchScalarGridSpec(
            num_scalar_prefetch=0,
            grid=(2, nc),
            in_specs=[
                pl.BlockSpec((Tc, B, 4 * H), pg_map),
                pl.BlockSpec((1, H, 4 * H), lambda d, c: (d, 0, 0)),
            ],
            out_specs=pl.BlockSpec((1, B, H), lambda d, c: (d, 0, 0)),
            scratch_shapes=[
                pltpu.VMEM((B, H), jnp.float32),   # h carry
                pltpu.VMEM((B, H), jnp.float32),   # c carry
            ],
        ),
        compiler_params=pltpu.CompilerParams(
            # direction axis parallel -> 2 TensorCores on v7x; time sequential.
            dimension_semantics=("parallel", "arbitrary"),
            vmem_limit_bytes=32 * 1024 * 1024,
        ),
    )(pregates, whh)


# ---------------------------------------------------------------------------
# Full model forward
# ---------------------------------------------------------------------------
@functools.partial(jax.jit, static_argnames=("time_chunk",))
def bi_lstm_forward(token_ids, params, *, time_chunk=None):
    B, T = token_ids.shape
    E = params["emb"].shape[1]
    H = params["whh"].shape[1]
    if time_chunk is None:
        time_chunk = next(c for c in (32, 16, 8, 4, 2, 1) if T % c == 0)

    # Embedding gather produced directly in (T, B, E) layout (no big transpose),
    # streamed to the matmul in bf16.
    # TODO(synk): the gather itself could be fused into Kernel 1 via scalar-
    # prefetched token ids + pl.Element row index_map.
    x_tbe = jnp.take(params["emb"], token_ids.T, axis=0).astype(jnp.bfloat16)
    x_flat = x_tbe.reshape(T * B, E)

    # One big matmul for both directions' input projections + bias.
    pregates = input_projection(x_flat, params["wih_cat"], params["bias_cat"])
    pregates = pregates.reshape(T, B, 8 * H)        # free reshape (leading dims)

    h_final = bilstm_final_hidden(pregates, params["whh"],
                                  hidden=H, time_chunk=time_chunk)  # (2, B, H)

    # torch.cat((h[-2], h[-1]), dim=1) == concat(fwd_final, bwd_final);
    # fc(2H -> 1) + sigmoid is tiny (N=1) -> plain XLA epilogue.
    hidden = jnp.concatenate([h_final[0], h_final[1]], axis=1)      # (B, 2H)
    # TODO(synk): dropout treated as identity (eval mode); training dropout
    # would use pltpu.prng_seed / prng_random_bits inside a kernel.
    logits = hidden @ params["w_fc"] + params["b_fc"]
    return jax.nn.sigmoid(logits)                                   # (B, 1)


def init_params(key, vocab_size, embedding_dim, lstm_size):
    E, H = embedding_dim, lstm_size
    ks = jax.random.split(key, 7)
    scale = 1.0 / jnp.sqrt(H)
    u = lambda k, shape: jax.random.uniform(k, shape, jnp.float32, -scale, scale)

    wih = u(ks[1], (2, 4 * H, E))      # PyTorch layout (dir, 4H, E)
    whh = u(ks[2], (2, 4 * H, H))
    b_ih = u(ks[3], (2, 4 * H))
    b_hh = u(ks[4], (2, 4 * H))

    wih_cat = jnp.concatenate([wih[0].T, wih[1].T], axis=1)          # (E, 8H)
    bias = b_ih + b_hh                                               # (2, 4H)
    bias_cat = jnp.concatenate([bias[0], bias[1]])[None, :]          # (1, 8H)
    whh_t = jnp.transpose(whh, (0, 2, 1))                            # (2, H, 4H)

    return {
        "emb": jax.random.normal(ks[0], (vocab_size, E), jnp.float32),
        "wih_cat": wih_cat.astype(jnp.bfloat16),
        "bias_cat": bias_cat.astype(jnp.float32),
        "whh": whh_t.astype(jnp.bfloat16),
        "w_fc": u(ks[5], (2 * H, 1)),
        "b_fc": u(ks[6], (1, 1)),
    }


# Pure-JAX reference mirroring the kernel's bf16 casts (for a sanity check).
def _reference_forward(token_ids, params):
    B, T = token_ids.shape
    H = params["whh"].shape[1]
    x = jnp.take(params["emb"], token_ids.T, axis=0).astype(jnp.bfloat16)
    x = x.astype(jnp.float32)                                        # (T, B, E)
    wih_cat = params["wih_cat"].astype(jnp.float32)
    whh = params["whh"].astype(jnp.float32)
    finals = []
    for d in range(2):
        w_ih = wih_cat[:, d * 4 * H:(d + 1) * 4 * H]
        b = params["bias_cat"][:, d * 4 * H:(d + 1) * 4 * H]
        w_hh = whh[d]
        h = jnp.zeros((B, H), jnp.float32)
        c = jnp.zeros((B, H), jnp.float32)
        times = range(T) if d == 0 else range(T - 1, -1, -1)
        for t in times:
            hb = h.astype(jnp.bfloat16).astype(jnp.float32)
            gates = x[t] @ w_ih + b + hb @ w_hh
            i_g = jax.nn.sigmoid(gates[:, 0 * H:1 * H])
            f_g = jax.nn.sigmoid(gates[:, 1 * H:2 * H])
            g_g = jnp.tanh(gates[:, 2 * H:3 * H])
            o_g = jax.nn.sigmoid(gates[:, 3 * H:4 * H])
            c = f_g * c + i_g * g_g
            h = o_g * jnp.tanh(c)
        finals.append(h)
    hidden = jnp.concatenate(finals, axis=1)
    return jax.nn.sigmoid(hidden @ params["w_fc"] + params["b_fc"])


if __name__ == "__main__":
    VOCAB, E, H = 50, 16, 32
    B, T = 2, 8

    key = jax.random.PRNGKey(0)
    k_tok, k_par = jax.random.split(key)

    token_ids = jax.random.randint(k_tok, (B, T), 0, VOCAB, dtype=jnp.int32)
    params = init_params(k_par, VOCAB, E, H)

    out = bi_lstm_forward(token_ids, params, time_chunk=4)  # exercises 2 chunks
    out = jax.block_until_ready(out)
    assert out.shape == (B, 1)

    ref = _reference_forward(token_ids, params)
    assert jnp.allclose(out, ref, atol=1e-2), (out, ref)

    print("KERNEL_OK")
</pallas_src>

<mosaic_0001>
module attributes {stable_mosaic.version = 11 : i64} {
  func.func @_pregate_kernel(%arg0: i32, %arg1: memref<16x16xbf16, #tpu.memory_space<vmem>>, %arg2: memref<16x256xbf16, #tpu.memory_space<vmem>>, %arg3: memref<1x256xf32, #tpu.memory_space<vmem>>, %arg4: memref<16x256xf32, #tpu.memory_space<vmem>>) attributes {dimension_semantics = [#tpu.dimension_semantics<parallel>], iteration_bounds = array<i64: 1>, scalar_prefetch = 0 : i64, scratch_operands = 0 : i64, tpu.core_type = #tpu.core_type<tc>, window_params = [{transform_indices = @transform_0, window_bounds = array<i64: 16, 16>}, {pipeline_mode = #tpu.pipeline_mode<synchronous>, transform_indices = @transform_1, window_bounds = array<i64: 16, 256>}, {pipeline_mode = #tpu.pipeline_mode<synchronous>, transform_indices = @transform_2, window_bounds = array<i64: 1, 256>}, {transform_indices = @transform_3, window_bounds = array<i64: 16, 256>}]} {
    %c0 = arith.constant 0 : index
    %c0_0 = arith.constant 0 : index
    %0 = vector.load %arg1[%c0, %c0_0] : memref<16x16xbf16, #tpu.memory_space<vmem>>, vector<16x16xbf16>
    %c0_1 = arith.constant 0 : index
    %c0_2 = arith.constant 0 : index
    %1 = vector.load %arg2[%c0_1, %c0_2] : memref<16x256xbf16, #tpu.memory_space<vmem>>, vector<16x256xbf16>
    %cst = arith.constant dense<0.000000e+00> : vector<16x256xf32>
    %2 = tpu.matmul %0, %1, %cst {dimension_numbers = #tpu.dot_dimension_numbers<[1], [0], [0], [1], [0, 0, 1, 1], [], []>} : vector<16x16xbf16>, vector<16x256xbf16>, vector<16x256xf32> -> vector<16x256xf32>
    %c0_3 = arith.constant 0 : index
    %c0_4 = arith.constant 0 : index
    %3 = vector.load %arg3[%c0_3, %c0_4] : memref<1x256xf32, #tpu.memory_space<vmem>>, vector<1x256xf32>
    %4 = vector.broadcast %3 : vector<1x256xf32> to vector<16x256xf32>
    %5 = arith.addf %2, %4 : vector<16x256xf32>
    %c0_5 = arith.constant 0 : index
    %c0_6 = arith.constant 0 : index
    %6 = vector.load %arg4[%c0_5, %c0_6] : memref<16x256xf32, #tpu.memory_space<vmem>>, vector<16x256xf32>
    tpu.vector_store %arg4[%c0_5, %c0_6], %5 {strides = array<i32>} : memref<16x256xf32, #tpu.memory_space<vmem>>, vector<16x256xf32>,
    return
  }
  func.func @transform_0(%arg0: i32) -> (i32, i32) {
    %c0_i32 = arith.constant 0 : i32
    %c0_i32_0 = arith.constant 0 : i32
    return %arg0, %c0_i32 : i32, i32
  }
  func.func @transform_1(%arg0: i32) -> (i32, i32) {
    %c0_i32 = arith.constant 0 : i32
    %c0_i32_0 = arith.constant 0 : i32
    %c0_i32_1 = arith.constant 0 : i32
    return %c0_i32, %c0_i32_0 : i32, i32
  }
  func.func @transform_2(%arg0: i32) -> (i32, i32) {
    %c0_i32 = arith.constant 0 : i32
    %c0_i32_0 = arith.constant 0 : i32
    %c0_i32_1 = arith.constant 0 : i32
    return %c0_i32, %c0_i32_0 : i32, i32
  }
  func.func @transform_3(%arg0: i32) -> (i32, i32) {
    %c0_i32 = arith.constant 0 : i32
    %c0_i32_0 = arith.constant 0 : i32
    return %arg0, %c0_i32 : i32, i32
  }
}

module attributes {stable_mosaic.version = 11 : i64} {
  func.func @kernel(%arg0: i32, %arg1: i32, %arg2: memref<4x2x128xf32, #tpu.memory_space<vmem>>, %arg3: memref<1x32x128xbf16, #tpu.memory_space<vmem>>, %arg4: memref<1x2x32xf32, #tpu.memory_space<vmem>>, %arg5: memref<2x32xf32, #tpu.memory_space<vmem>>, %arg6: memref<2x32xf32, #tpu.memory_space<vmem>>) attributes {dimension_semantics = [#tpu.dimension_semantics<parallel>, #tpu.dimension_semantics<arbitrary>], iteration_bounds = array<i64: 2, 2>, scalar_prefetch = 0 : i64, scratch_operands = 2 : i64, tpu.core_type = #tpu.core_type<tc>, window_params = [{transform_indices = @transform_0, window_bounds = array<i64: 4, 2, 128>}, {transform_indices = @transform_1, window_bounds = array<i64: 1, 32, 128>}, {transform_indices = @transform_2, window_bounds = array<i64: 1, 2, 32>}]} {
    %c0_i32 = arith.constant 0 : i32
    %0 = arith.cmpi eq, %arg1, %c0_i32 : i32
    %1 = arith.extui %0 : i1 to i32
    %c0_i32_0 = arith.constant 0 : i32
    %2 = arith.cmpi ne, %1, %c0_i32_0 : i32
    scf.if %2 {
      %cst_45 = arith.constant 0.000000e+00 : f32
      %152 = vector.broadcast %cst_45 : f32 to vector<2x32xf32>
      %c0_46 = arith.constant 0 : index
      %c0_47 = arith.constant 0 : index
      %153 = vector.load %arg5[%c0_46, %c0_47] : memref<2x32xf32, #tpu.memory_space<vmem>>, vector<2x32xf32>
      tpu.vector_store %arg5[%c0_46, %c0_47], %152 {strides = array<i32>} : memref<2x32xf32, #tpu.memory_space<vmem>>, vector<2x32xf32>,
      %cst_48 = arith.constant 0.000000e+00 : f32
      %154 = vector.broadcast %cst_48 : f32 to vector<2x32xf32>
      %c0_49 = arith.constant 0 : index
      %c0_50 = arith.constant 0 : index
      %155 = vector.load %arg6[%c0_49, %c0_50] : memref<2x32xf32, #tpu.memory_space<vmem>>, vector<2x32xf32>
      tpu.vector_store %arg6[%c0_49, %c0_50], %154 {strides = array<i32>} : memref<2x32xf32, #tpu.memory_space<vmem>>, vector<2x32xf32>,
    } else {
    }
    %c0 = arith.constant 0 : index
    %c0_1 = arith.constant 0 : index
    %c0_2 = arith.constant 0 : index
    %3 = vector.load %arg3[%c0, %c0_1, %c0_2] : memref<1x32x128xbf16, #tpu.memory_space<vmem>>, vector<1x32x128xbf16>
    %4 = vector.shape_cast %3 : vector<1x32x128xbf16> to vector<32x128xbf16>
    %c0_3 = arith.constant 0 : index
    %c0_4 = arith.constant 0 : index
    %5 = vector.load %arg5[%c0_3, %c0_4] : memref<2x32xf32, #tpu.memory_space<vmem>>, vector<2x32xf32>
    %c0_5 = arith.constant 0 : index
    %c0_6 = arith.constant 0 : index
    %6 = vector.load %arg6[%c0_5, %c0_6] : memref<2x32xf32, #tpu.memory_space<vmem>>, vector<2x32xf32>
    %c0_i32_7 = arith.constant 0 : i32
    %c2_i32 = arith.constant 2 : i32
    %7 = arith.muli %c2_i32, %c0_i32_7 : i32
    %c3_i32 = arith.constant 3 : i32
    %8 = arith.subi %c3_i32, %7 : i32
    %9 = arith.muli %arg0, %8 : i32
    %10 = arith.addi %c0_i32_7, %9 : i32
    %11 = arith.index_cast %10 : i32 to index
    %c0_8 = arith.constant 0 : index
    %c0_9 = arith.constant 0 : index
    %12 = vector.load %arg2[%11, %c0_8, %c0_9] : memref<4x2x128xf32, #tpu.memory_space<vmem>>, vector<1x2x128xf32>
    %13 = vector.shape_cast %12 : vector<1x2x128xf32> to vector<2x128xf32>
    %14 = arith.truncf %5 : vector<2x32xf32> to vector<2x32xbf16>
    %cst = arith.constant dense<0.000000e+00> : vector<2x128xf32>
    %15 = tpu.matmul %14, %4, %cst {dimension_numbers = #tpu.dot_dimension_numbers<[1], [0], [0], [1], [0, 0, 1, 1], [], []>} : vector<2x32xbf16>, vector<32x128xbf16>, vector<2x128xf32> -> vector<2x128xf32>
    %16 = arith.addf %13, %15 : vector<2x128xf32>
    %17 = vector.extract_strided_slice %16 {offsets = [0, 0], sizes = [2, 32], strides = [1, 1]} : vector<2x128xf32> to vector<2x32xf32>
    %18 = arith.negf %17 : vector<2x32xf32>
    %19 = math.exp %18 : vector<2x32xf32>
    %cst_10 = arith.constant 1.000000e+00 : f32
    %20 = vector.broadcast %cst_10 : f32 to vector<2x32xf32>
    %21 = arith.addf %20, %19 : vector<2x32xf32>
    %22 = arith.divf %20, %21 : vector<2x32xf32>
    %23 = vector.extract_strided_slice %16 {offsets = [0, 32], sizes = [2, 32], strides = [1, 1]} : vector<2x128xf32> to vector<2x32xf32>
    %24 = arith.negf %23 : vector<2x32xf32>
    %25 = math.exp %24 : vector<2x32xf32>
    %cst_11 = arith.constant 1.000000e+00 : f32
    %26 = vector.broadcast %cst_11 : f32 to vector<2x32xf32>
    %27 = arith.addf %26, %25 : vector<2x32xf32>
    %28 = arith.divf %26, %27 : vector<2x32xf32>
    %29 = vector.extract_strided_slice %16 {offsets = [0, 64], sizes = [2, 32], strides = [1, 1]} : vector<2x128xf32> to vector<2x32xf32>
    %30 = math.tanh %29 : vector<2x32xf32>
    %31 = vector.extract_strided_slice %16 {offsets = [0, 96], sizes = [2, 32], strides = [1, 1]} : vector<2x128xf32> to vector<2x32xf32>
    %32 = arith.negf %31 : vector<2x32xf32>
    %33 = math.exp %32 : vector<2x32xf32>
    %cst_12 = arith.constant 1.000000e+00 : f32
    %34 = vector.broadcast %cst_12 : f32 to vector<2x32xf32>
    %35 = arith.addf %34, %33 : vector<2x32xf32>
    %36 = arith.divf %34, %35 : vector<2x32xf32>
    %37 = arith.mulf %28, %6 : vector<2x32xf32>
    %38 = arith.mulf %22, %30 : vector<2x32xf32>
    %39 = arith.addf %37, %38 : vector<2x32xf32>
    %40 = math.tanh %39 : vector<2x32xf32>
    %41 = arith.mulf %36, %40 : vector<2x32xf32>
    %c1_i32 = arith.constant 1 : i32
    %c2_i32_13 = arith.constant 2 : i32
    %42 = arith.muli %c2_i32_13, %c1_i32 : i32
    %c3_i32_14 = arith.constant 3 : i32
    %43 = arith.subi %c3_i32_14, %42 : i32
    %44 = arith.muli %arg0, %43 : i32
    %45 = arith.addi %c1_i32, %44 : i32
    %46 = arith.index_cast %45 : i32 to index
    %c0_15 = arith.constant 0 : index
    %c0_16 = arith.constant 0 : index
    %47 = vector.load %arg2[%46, %c0_15, %c0_16] : memref<4x2x128xf32, #tpu.memory_space<vmem>>, vector<1x2x128xf32>
    %48 = vector.shape_cast %47 : vector<1x2x128xf32> to vector<2x128xf32>
    %49 = arith.truncf %41 : vector<2x32xf32> to vector<2x32xbf16>
    %cst_17 = arith.constant dense<0.000000e+00> : vector<2x128xf32>
    %50 = tpu.matmul %49, %4, %cst_17 {dimension_numbers = #tpu.dot_dimension_numbers<[1], [0], [0], [1], [0, 0, 1, 1], [], []>} : vector<2x32xbf16>, vector<32x128xbf16>, vector<2x128xf32> -> vector<2x128xf32>
    %51 = arith.addf %48, %50 : vector<2x128xf32>
    %52 = vector.extract_strided_slice %51 {offsets = [0, 0], sizes = [2, 32], strides = [1, 1]} : vector<2x128xf32> to vector<2x32xf32>
    %53 = arith.negf %52 : vector<2x32xf32>
    %54 = math.exp %53 : vector<2x32xf32>
    %cst_18 = arith.constant 1.000000e+00 : f32
    %55 = vector.broadcast %cst_18 : f32 to vector<2x32xf32>
    %56 = arith.addf %55, %54 : vector<2x32xf32>
    %57 = arith.divf %55, %56 : vector<2x32xf32>
    %58 = vector.extract_strided_slice %51 {offsets = [0, 32], sizes = [2, 32], strides = [1, 1]} : vector<2x128xf32> to vector<2x32xf32>
    %59 = arith.negf %58 : vector<2x32xf32>
    %60 = math.exp %59 : vector<2x32xf32>
    %cst_19 = arith.constant 1.000000e+00 : f32
    %61 = vector.broadcast %cst_19 : f32 to vector<2x32xf32>
    %62 = arith.addf %61, %60 : vector<2x32xf32>
    %63 = arith.divf %61, %62 : vector<2x32xf32>
    %64 = vector.extract_strided_slice %51 {offsets = [0, 64], sizes = [2, 32], strides = [1, 1]} : vector<2x128xf32> to vector<2x32xf32>
    %65 = math.tanh %64 : vector<2x32xf32>
    %66 = vector.extract_strided_slice %51 {offsets = [0, 96], sizes = [2, 32], strides = [1, 1]} : vector<2x128xf32> to vector<2x32xf32>
    %67 = arith.negf %66 : vector<2x32xf32>
    %68 = math.exp %67 : vector<2x32xf32>
    %cst_20 = arith.constant 1.000000e+00 : f32
    %69 = vector.broadcast %cst_20 : f32 to vector<2x32xf32>
    %70 = arith.addf %69, %68 : vector<2x32xf32>
    %71 = arith.divf %69, %70 : vector<2x32xf32>
    %72 = arith.mulf %63, %39 : vector<2x32xf32>
    %73 = arith.mulf %57, %65 : vector<2x32xf32>
    %74 = arith.addf %72, %73 : vector<2x32xf32>
    %75 = math.tanh %74 : vector<2x32xf32>
    %76 = arith.mulf %71, %75 : vector<2x32xf32>
    %c2_i32_21 = arith.constant 2 : i32
    %c2_i32_22 = arith.constant 2 : i32
    %77 = arith.muli %c2_i32_22, %c2_i32_21 : i32
    %c3_i32_23 = arith.constant 3 : i32
    %78 = arith.subi %c3_i32_23, %77 : i32
    %79 = arith.muli %arg0, %78 : i32
    %80 = arith.addi %c2_i32_21, %79 : i32
    %81 = arith.index_cast %80 : i32 to index
    %c0_24 = arith.constant 0 : index
    %c0_25 = arith.constant 0 : index
    %82 = vector.load %arg2[%81, %c0_24, %c0_25] : memref<4x2x128xf32, #tpu.memory_space<vmem>>, vector<1x2x128xf32>
    %83 = vector.shape_cast %82 : vector<1x2x128xf32> to vector<2x128xf32>
    %84 = arith.truncf %76 : vector<2x32xf32> to vector<2x32xbf16>
    %cst_26 = arith.constant dense<0.000000e+00> : vector<2x128xf32>
    %85 = tpu.matmul %84, %4, %cst_26 {dimension_numbers = #tpu.dot_dimension_numbers<[1], [0], [0], [1], [0, 0, 1, 1], [], []>} : vector<2x32xbf16>, vector<32x128xbf16>, vector<2x128xf32> -> vector<2x128xf32>
    %86 = arith.addf %83, %85 : vector<2x128xf32>
    %87 = vector.extract_strided_slice %86 {offsets = [0, 0], sizes = [2, 32], strides = [1, 1]} : vector<2x128xf32> to vector<2x32xf32>
    %88 = arith.negf %87 : vector<2x32xf32>
    %89 = math.exp %88 : vector<2x32xf32>
    %cst_27 = arith.constant 1.000000e+00 : f32
    %90 = vector.broadcast %cst_27 : f32 to vector<2x32xf32>
    %91 = arith.addf %90, %89 : vector<2x32xf32>
    %92 = arith.divf %90, %91 : vector<2x32xf32>
    %93 = vector.extract_strided_slice %86 {offsets = [0, 32], sizes = [2, 32], strides = [1, 1]} : vector<2x128xf32> to vector<2x32xf32>
    %94 = arith.negf %93 : vector<2x32xf32>
    %95 = math.exp %94 : vector<2x32xf32>
    %cst_28 = arith.constant 1.000000e+00 : f32
    %96 = vector.broadcast %cst_28 : f32 to vector<2x32xf32>
    %97 = arith.addf %96, %95 : vector<2x32xf32>
    %98 = arith.divf %96, %97 : vector<2x32xf32>
    %99 = vector.extract_strided_slice %86 {offsets = [0, 64], sizes = [2, 32], strides = [1, 1]} : vector<2x128xf32> to vector<2x32xf32>
    %100 = math.tanh %99 : vector<2x32xf32>
    %101 = vector.extract_strided_slice %86 {offsets = [0, 96], sizes = [2, 32], strides = [1, 1]} : vector<2x128xf32> to vector<2x32xf32>
    %102 = arith.negf %101 : vector<2x32xf32>
    %103 = math.exp %102 : vector<2x32xf32>
    %cst_29 = arith.constant 1.000000e+00 : f32
    %104 = vector.broadcast %cst_29 : f32 to vector<2x32xf32>
    %105 = arith.addf %104, %103 : vector<2x32xf32>
    %106 = arith.divf %104, %105 : vector<2x32xf32>
    %107 = arith.mulf %98, %74 : vector<2x32xf32>
    %108 = arith.mulf %92, %100 : vector<2x32xf32>
    %109 = arith.addf %107, %108 : vector<2x32xf32>
    %110 = math.tanh %109 : vector<2x32xf32>
    %111 = arith.mulf %106, %110 : vector<2x32xf32>
    %c3_i32_30 = arith.constant 3 : i32
    %c2_i32_31 = arith.constant 2 : i32
    %112 = arith.muli %c2_i32_31, %c3_i32_30 : i32
    %c3_i32_32 = arith.constant 3 : i32
    %113 = arith.subi %c3_i32_32, %112 : i32
    %114 = arith.muli %arg0, %113 : i32
    %115 = arith.addi %c3_i32_30, %114 : i32
    %116 = arith.index_cast %115 : i32 to index
    %c0_33 = arith.constant 0 : index
    %c0_34 = arith.constant 0 : index
    %117 = vector.load %arg2[%116, %c0_33, %c0_34] : memref<4x2x128xf32, #tpu.memory_space<vmem>>, vector<1x2x128xf32>
    %118 = vector.shape_cast %117 : vector<1x2x128xf32> to vector<2x128xf32>
    %119 = arith.truncf %111 : vector<2x32xf32> to vector<2x32xbf16>
    %cst_35 = arith.constant dense<0.000000e+00> : vector<2x128xf32>
    %120 = tpu.matmul %119, %4, %cst_35 {dimension_numbers = #tpu.dot_dimension_numbers<[1], [0], [0], [1], [0, 0, 1, 1], [], []>} : vector<2x32xbf16>, vector<32x128xbf16>, vector<2x128xf32> -> vector<2x128xf32>
    %121 = arith.addf %118, %120 : vector<2x128xf32>
    %122 = vector.extract_strided_slice %121 {offsets = [0, 0], sizes = [2, 32], strides = [1, 1]} : vector<2x128xf32> to vector<2x32xf32>
    %123 = arith.negf %122 : vector<2x32xf32>
    %124 = math.exp %123 : vector<2x32xf32>
    %cst_36 = arith.constant 1.000000e+00 : f32
    %125 = vector.broadcast %cst_36 : f32 to vector<2x32xf32>
    %126 = arith.addf %125, %124 : vector<2x32xf32>
    %127 = arith.divf %125, %126 : vector<2x32xf32>
    %128 = vector.extract_strided_slice %121 {offsets = [0, 32], sizes = [2, 32], strides = [1, 1]} : vector<2x128xf32> to vector<2x32xf32>
    %129 = arith.negf %128 : vector<2x32xf32>
    %130 = math.exp %129 : vector<2x32xf32>
    %cst_37 = arith.constant 1.000000e+00 : f32
    %131 = vector.broadcast %cst_37 : f32 to vector<2x32xf32>
    %132 = arith.addf %131, %130 : vector<2x32xf32>
    %133 = arith.divf %131, %132 : vector<2x32xf32>
    %134 = vector.extract_strided_slice %121 {offsets = [0, 64], sizes = [2, 32], strides = [1, 1]} : vector<2x128xf32> to vector<2x32xf32>
    %135 = math.tanh %134 : vector<2x32xf32>
    %136 = vector.extract_strided_slice %121 {offsets = [0, 96], sizes = [2, 32], strides = [1, 1]} : vector<2x128xf32> to vector<2x32xf32>
    %137 = arith.negf %136 : vector<2x32xf32>
    %138 = math.exp %137 : vector<2x32xf32>
    %cst_38 = arith.constant 1.000000e+00 : f32
    %139 = vector.broadcast %cst_38 : f32 to vector<2x32xf32>
    %140 = arith.addf %139, %138 : vector<2x32xf32>
    %141 = arith.divf %139, %140 : vector<2x32xf32>
    %142 = arith.mulf %133, %109 : vector<2x32xf32>
    %143 = arith.mulf %127, %135 : vector<2x32xf32>
    %144 = arith.addf %142, %143 : vector<2x32xf32>
    %145 = math.tanh %144 : vector<2x32xf32>
    %146 = arith.mulf %141, %145 : vector<2x32xf32>
    %c4_i32 = arith.constant 4 : i32
    %c0_39 = arith.constant 0 : index
    %c0_40 = arith.constant 0 : index
    %147 = vector.load %arg5[%c0_39, %c0_40] : memref<2x32xf32, #tpu.memory_space<vmem>>, vector<2x32xf32>
    tpu.vector_store %arg5[%c0_39, %c0_40], %146 {strides = array<i32>} : memref<2x32xf32, #tpu.memory_space<vmem>>, vector<2x32xf32>,
    %c0_41 = arith.constant 0 : index
    %c0_42 = arith.constant 0 : index
    %148 = vector.load %arg6[%c0_41, %c0_42] : memref<2x32xf32, #tpu.memory_space<vmem>>, vector<2x32xf32>
    tpu.vector_store %arg6[%c0_41, %c0_42], %144 {strides = array<i32>} : memref<2x32xf32, #tpu.memory_space<vmem>>, vector<2x32xf32>,
    %c1_i32_43 = arith.constant 1 : i32
    %149 = arith.cmpi eq, %arg1, %c1_i32_43 : i32
    %150 = arith.extui %149 : i1 to i32
    %c0_i32_44 = arith.constant 0 : i32
    %151 = arith.cmpi ne, %150, %c0_i32_44 : i32
    scf.if %151 {
      %c0_45 = arith.constant 0 : index
      %c0_46 = arith.constant 0 : index
      %c0_47 = arith.constant 0 : index
      %152 = vector.load %arg4[%c0_45, %c0_46, %c0_47] : memref<1x2x32xf32, #tpu.memory_space<vmem>>, vector<1x2x32xf32>
      %153 = vector.shape_cast %152 : vector<1x2x32xf32> to vector<2x32xf32>
      %154 = vector.shape_cast %146 : vector<2x32xf32> to vector<1x2x32xf32>
      tpu.vector_store %arg4[%c0_45, %c0_46, %c0_47], %154 {strides = array<i32>} : memref<1x2x32xf32, #tpu.memory_space<vmem>>, vector<1x2x32xf32>,
    } else {
    }
    return
  }
  func.func @transform_0(%arg0: i32, %arg1: i32) -> (i32, i32, i32) {
    %c2_i32 = arith.constant 2 : i32
    %0 = arith.muli %c2_i32, %arg1 : i32
    %c1_i32 = arith.constant 1 : i32
    %1 = arith.subi %c1_i32, %0 : i32
    %2 = arith.muli %arg0, %1 : i32
    %3 = arith.addi %arg1, %2 : i32
    %c0_i32 = arith.constant 0 : i32
    %c0_i32_0 = arith.constant 0 : i32
    return %3, %c0_i32, %arg0 : i32, i32, i32
  }
  func.func @transform_1(%arg0: i32, %arg1: i32) -> (i32, i32, i32) {
    %c0_i32 = arith.constant 0 : i32
    %c0_i32_0 = arith.constant 0 : i32
    %c0_i32_1 = arith.constant 0 : i32
    return %arg0, %c0_i32, %c0_i32_0 : i32, i32, i32
  }
  func.func @transform_2(%arg0: i32, %arg1: i32) -> (i32, i32, i32) {
    %c0_i32 = arith.constant 0 : i32
    %c0_i32_0 = arith.constant 0 : i32
    %c0_i32_1 = arith.constant 0 : i32
    return %arg0, %c0_i32, %c0_i32_0 : i32, i32, i32
  }
}

</mosaic_0001>

<llo_original>
// kernel: bi_lstm_forward.2
$region0: #{bi_lstm_forward.2}
  #allocation0 [shape = 'u32[]', space=smem, size = 0x4, offset = 0x4, fixed_abs, tag = 'smem constant byte address 0x4 - core index']
  #allocation1 [shape = 'u32[144,128]{1,0:T(1,128)}', space=vmem, size = 0x12000, scoped, tag = 'internal scratch']
  %s0 = inlined_call_operand.vmem [shape: bf16[16,16], index: 0, kind: input, shape index: {}]
  %s1 = inlined_call_operand.vmem [shape: bf16[16,256], index: 1, kind: input, shape index: {}]
  %s2 = inlined_call_operand.vmem [shape: f32[1,256], index: 2, kind: input, shape index: {}]
  %s3 = inlined_call_operand.vmem [shape: f32[16,256], index: 3, kind: output, shape index: {}]
  %s4 = sld [smem:[#allocation0]]
  $region22: #{bi_lstm_forward.2} parent=0
    _
  %s6 = ssub.s32 1, %s4
  %s7 = scalar_select 0, %s6, %s4
  // Predicated region
  $region2: #{bi_lstm_forward.2} parent=0 // pred_check
    _
  $region3: #{bi_lstm_forward.2} parent=0 // pred_check_branch
    %9 = sbr.rel (0) target = $region5
  $region4: #{bi_lstm_forward.2} parent=0 // pred_region
    _
  $region5: #{bi_lstm_forward.2} parent=0 // pred_fallthru
    _
  // Predicated region
  $region6: #{bi_lstm_forward.2} parent=0 // pred_check
    _
  $region7: #{bi_lstm_forward.2} parent=0 // pred_check_branch
    %11 = sbr.rel (0) target = $region9
  $region8: #{bi_lstm_forward.2} parent=0 // pred_region
    _
  $region9: #{bi_lstm_forward.2} parent=0 // pred_fallthru
    _
  // Predicated region
  $region10: #{bi_lstm_forward.2} parent=0 // pred_check
    _
  $region11: #{bi_lstm_forward.2} parent=0 // pred_check_branch
    %13 = sbr.rel (0) target = $region13
  $region12: #{bi_lstm_forward.2} parent=0 // pred_region
    _
  $region13: #{bi_lstm_forward.2} parent=0 // pred_fallthru
    _
  %v15 = vld [vmem:[%s0] sm:$0xf]
  %v16 = vld [vmem:[%s0 + $0x4] sm:$0xf]
  %v17 = vld [vmem:[%s1] sm:$0xff]
  %v18 = vld [vmem:[%s1 + $0x8] sm:$0xff]
  %v19 = vld [vmem:[%s2] sm:$0x3]
  %v21 = vlaneseq
  %v22 = vshrl.u32 %v21, 7
  %v23 = vsub.s32 0, %v22
  %v24 = vrot.slane %v19, %v23
  %v25 = vlaneseq
  %v26 = vshrl.u32 %v25, 7
  %v27 = vsub.s32 1, %v26
  %v28 = vrot.slane %v19, %v27
  %v33 = vunpack.c.l.b16 %v15
  %v34 = vunpack.c.l.b16 %v16
  %v35 = vpack.c.b16 %v34, %v33
  %v38 = vunpack.c.l.b16 %v17
  %v39 = vunpack.c.h.b16 %v17
  %v40 = vunpack.c.l.b16 %v18
  %v41 = vunpack.c.h.b16 %v18
  %v42 = vpack.c.b16 %v40, %v38
  %v43 = vpack.c.b16 %v41, %v39
  %vm46 = vcmask 130048
  %v48 = vsel %vm46, %v35, 0
  %50 = vmatprep.subr.bf16.mxu0 %v43
  %51 = vmatpush1.bf16.msra.mxu0 %v42
  %52 = vmatprep.subr.bf16.mxu0 0
  %53 = vmatpush1.bf16.msra.mxu0 0
  %54 = vmatprep.subr.bf16.mxu0 0
  %55 = vmatpush1.bf16.msra.mxu0 0
  %56 = vmatprep.subr.bf16.mxu0 0
  %57 = vmatpush1.bf16.msra.mxu0 0
  %58 = vmatprep.subr.bf16.mxu0 0
  %59 = vmatpush1.bf16.msra.mxu0 0
  %60 = vmatprep.subr.bf16.mxu0 0
  %61 = vmatpush1.bf16.msra.mxu0 0
  %62 = vmatprep.subr.bf16.mxu0 0
  %63 = vmatpush1.bf16.msra.mxu0 0
  %64 = vmatprep.subr.bf16.mxu0 0
  %65 = vmatpush1.bf16.msra.mxu0 0
  %66 = vmatprep.subr.bf16.mxu0 0
  %67 = vmatpush1.bf16.msra.mxu0 0
  %68 = vmatprep.subr.bf16.mxu0 0
  %69 = vmatpush1.bf16.msra.mxu0 0
  %70 = vmatprep.subr.bf16.mxu0 0
  %71 = vmatpush1.bf16.msra.mxu0 0
  %72 = vmatprep.subr.bf16.mxu0 0
  %73 = vmatpush1.bf16.msra.mxu0 0
  %74 = vmatprep.subr.bf16.mxu0 0
  %75 = vmatpush1.bf16.msra.mxu0 0
  %76 = vmatprep.subr.bf16.mxu0 0
  %77 = vmatpush1.bf16.msra.mxu0 0
  %78 = vmatprep.subr.bf16.mxu0 0
  %79 = vmatpush1.bf16.msra.mxu0 0
  %80 = vmatprep.subr.bf16.mxu0 0
  %81 = vmatpush1.bf16.msra.mxu0 0
  %82 = vmatprep.mubr.bf16.mxu0 0
  %83 = vmatmul.mubr.bf16.gmra.mrb[0].mxu0 %v48
  %v84 = vpop.f32.mrb[0].mxu0
  %v85 = vadd.f32 %v24, %v84
  %v86 = vpop.f32.mrb[0].mxu0
  %v87 = vadd.f32 %v28, %v86
  %v88 = vpop.f32.mrb[0].mxu0
  %v89 = vadd.f32 %v24, %v88
  %v90 = vpop.f32.mrb[0].mxu0
  %v91 = vadd.f32 %v28, %v90
  %92 = vdwg.mxu0
  %93 = vst [vmem:[%s3] sm:$0xff] %v85
  %94 = vst [vmem:[%s3 + $0x8] sm:$0xff] %v87
  %95 = vst [vmem:[%s3 + $0x10] sm:$0xff] %v89
  %96 = vst [vmem:[%s3 + $0x18] sm:$0xff] %v91
  // Predicated region
  $region14: #{bi_lstm_forward.2} parent=0 // pred_check
    _
  $region15: #{bi_lstm_forward.2} parent=0 // pred_check_branch
    %98 = sbr.rel (0) target = $region17
  $region16: #{bi_lstm_forward.2} parent=0 // pred_region
    _
  $region17: #{bi_lstm_forward.2} parent=0 // pred_fallthru
    _
  // Predicated region
  $region18: #{bi_lstm_forward.2} parent=0 // pred_check
    _
  $region19: #{bi_lstm_forward.2} parent=0 // pred_check_branch
    %100 = sbr.rel (0) target = $region21
  $region20: #{bi_lstm_forward.2} parent=0 // pred_region
    _
  $region21: #{bi_lstm_forward.2} parent=0 // pred_fallthru
    _

// kernel: bi_lstm_forward.3
$region0: #{bi_lstm_forward.3}
  #allocation0 [shape = 'u32[]', space=smem, size = 0x4, offset = 0x4, fixed_abs, tag = 'smem constant byte address 0x4 - core index']
  #allocation1 [shape = 'u32[144,128]{1,0:T(1,128)}', space=vmem, size = 0x12000, scoped, tag = 'internal scratch']
  #allocation2 [shape = 'f32[2,32]{1,0:T(2,128)}', space=vmem, size = 0x400, scoped, tag = 'scratch operand']
  #allocation3 [shape = 'f32[2,32]{1,0:T(2,128)}', space=vmem, size = 0x400, scoped, tag = 'scratch operand']
  %s0 = inlined_call_operand.vmem [shape: f32[8,2,256], index: 0, kind: input, shape index: {}]
  %s1 = inlined_call_operand.vmem [shape: bf16[2,32,128], index: 1, kind: input, shape index: {}]
  %s2 = inlined_call_operand.vmem [shape: f32[2,2,32], index: 2, kind: output, shape index: {}]
  %s3 = sld [smem:[#allocation0]]
  $region90: #{bi_lstm_forward.3} parent=0
    _
  %s5 = ssub.s32 1, %s3
  %s6 = scalar_select 0, %s5, %s3
  $region1: #{bi_lstm_forward.3} parent=0
    #allocation4 [shape = 'u8[8192]{0}', space=vmem, size = 0x2000, scoped, tag = 'input window, operand 0']
    loop: start=0, step=1, limit=6
    $region2: #{bi_lstm_forward.3} parent=1 // loop_pre_header
      _
    $region3: #{bi_lstm_forward.3} parent=1 // loop_header
      %s8 = sphi 0, %s12
      %p9 = scmp.ge.s32.totalorder %s8, 6
      %s15 = sphi 0, %s27
      %s16 = sphi 0, %s23
      %s17 = sphi 0, %s15
      %s18 = sphi 0, %s16
      %s19 = sphi 0, %s17
      %s20 = sphi 0, %s18
      %s40 = sphi 0, %s42
      %s43 = sphi 0, %s40
      %s44 = sphi 0, %s43
      %s60 = sphi 0, %s44
      %s66 = sphi 0, %s68
      %s69 = sphi 0, %s66
      %s70 = sphi 0, %s69
      %s86 = sphi 0, %s70
      %s92 = sphi 0, %s94
      %s95 = sphi 0, %s92
      %s96 = sphi 0, %s95
      %s112 = sphi 0, %s96
    $region4: #{bi_lstm_forward.3} parent=1 // loop_header_branch
      %11 = sbr.rel (%p9) target = $region8
    $region5: #{bi_lstm_forward.3} parent=1 // loop_body
      %s13 = ssub.s32 %s8, 1
      %s14 = ssub.s32 %s8, 2
      %s21 = sadd.s32 1, %s16
      %p22 = scmp.ge.s32.totalorder %s21, 2
      %s23 = scalar_select %p22, 0, %s21
      %s24 = sadd.s32 1, %s15
      %s25 = scalar_select %p22, %s24, %s15
      %p26 = scmp.ge.s32.totalorder %s25, 2
      %s27 = scalar_select %p26, 0, %s25
      %s28 = smul.u32 %s16, 2
      %s29 = ssub.s32 1, %s28
      %s30 = smul.u32 %s15, %s29
      %s31 = sadd.s32 %s16, %s30
      %s32 = smul.u32 %s23, 2
      %s33 = ssub.s32 1, %s32
      %s34 = smul.u32 %s27, %s33
      %s35 = sadd.s32 %s23, %s34
      %s36 = ssub.s32 %s31, %s35
      %s37 = ssub.s32 %s15, %s27
      %s38 = sor.u32 %s36, %s37
      %p39 = scmp.eq.s32.totalorder %s38, 0
      %s41 = sadd.s32 %s40, 1
      %s42 = scalar_select %p39, %s40, %s41
      %p45 = pneg %p39
      %p46 = scmp.eq.s32.totalorder %s8, 3
      %p47 = por %p45, %p46
      %p48 = scmp.ne.s32.totalorder %s40, %s43
      %p49 = scmp.eq.s32.totalorder %s8, 0
      %p50 = por %p48, %p49
      %p51 = scmp.ne.s32.totalorder %s40, %s43
      %p52 = scmp.eq.s32.totalorder %s13, 3
      %p53 = por %p51, %p52
      %p54 = scmp.ne.s32.totalorder %s43, %s44
      %p55 = scmp.eq.s32.totalorder %s13, 0
      %p56 = por %p54, %p55
      %p57 = scmp.ne.s32.totalorder %s43, %s44
      %p58 = scmp.eq.s32.totalorder %s14, 3
      %p59 = por %p57, %p58
      %p61 = scmp.ne.s32.totalorder %s44, %s60
      %p62 = scmp.eq.s32.totalorder %s14, 0
      %p63 = por %p61, %p62
      %s64 = ssub.s32 %s15, %s27
      %p65 = scmp.eq.s32.totalorder %s64, 0
      %s67 = sadd.s32 %s66, 1
      %s68 = scalar_select %p65, %s66, %s67
      %p71 = pneg %p65
      %p72 = scmp.eq.s32.totalorder %s8, 3
      %p73 = por %p71, %p72
      %p74 = scmp.ne.s32.totalorder %s66, %s69
      %p75 = scmp.eq.s32.totalorder %s8, 0
      %p76 = por %p74, %p75
      %p77 = scmp.ne.s32.totalorder %s66, %s69
      %p78 = scmp.eq.s32.totalorder %s13, 3
      %p79 = por %p77, %p78
      %p80 = scmp.ne.s32.totalorder %s69, %s70
      %p81 = scmp.eq.s32.totalorder %s13, 0
      %p82 = por %p80, %p81
      %p83 = scmp.ne.s32.totalorder %s69, %s70
      %p84 = scmp.eq.s32.totalorder %s14, 3
      %p85 = por %p83, %p84
      %p87 = scmp.ne.s32.totalorder %s70, %s86
      %p88 = scmp.eq.s32.totalorder %s14, 0
      %p89 = por %p87, %p88
      %s90 = ssub.s32 %s15, %s27
      %p91 = scmp.eq.s32.totalorder %s90, 0
      %s93 = sadd.s32 %s92, 1
      %s94 = scalar_select %p91, %s92, %s93
      %p97 = pneg %p91
      %p98 = scmp.eq.s32.totalorder %s8, 3
      %p99 = por %p97, %p98
      %p100 = scmp.ne.s32.totalorder %s92, %s95
      %p101 = scmp.eq.s32.totalorder %s8, 0
      %p102 = por %p100, %p101
      %p103 = scmp.ne.s32.totalorder %s92, %s95
      %p104 = scmp.eq.s32.totalorder %s13, 3
      %p105 = por %p103, %p104
      %p106 = scmp.ne.s32.totalorder %s95, %s96
      %p107 = scmp.eq.s32.totalorder %s13, 0
      %p108 = por %p106, %p107
      %p109 = scmp.ne.s32.totalorder %s95, %s96
      %p110 = scmp.eq.s32.totalorder %s14, 3
      %p111 = por %p109, %p110
      %p113 = scmp.ne.s32.totalorder %s96, %s112
      %p114 = scmp.eq.s32.totalorder %s14, 0
      %p115 = por %p113, %p114
      %p116 = scmp.le.s32.totalorder 1, %s8
      %p117 = scmp.lt.s32.totalorder %s8, 5
      %p118 = pnand %p116, %p117
      %p119 = pneg %p118
      // Predicated region
      $region9: #{bi_lstm_forward.3} parent=5 // pred_check
        _
      $region10: #{bi_lstm_forward.3} parent=5 // pred_check_branch
        %121 = sbr.rel (%p118) target = $region12
      $region11: #{bi_lstm_forward.3} parent=5 // pred_region
        %s122 = ssub.s32 %s8, 1
      $region12: #{bi_lstm_forward.3} parent=5 // pred_fallthru
        _
      %p123 = scmp.lt.s32.totalorder %s8, 4
      // Predicated region
      $region13: #{bi_lstm_forward.3} parent=5 // pred_check
        %p124 = pneg %p123
      $region14: #{bi_lstm_forward.3} parent=5 // pred_check_branch
        %126 = sbr.rel (%p124) target = $region16
      $region15: #{bi_lstm_forward.3} parent=5 // pred_region
        // Predicated region
        $region17: #{bi_lstm_forward.3} parent=15 // pred_check
          %p127 = pneg %p50
        $region18: #{bi_lstm_forward.3} parent=15 // pred_check_branch
          %129 = sbr.rel (%p127) target = $region20
        $region19: #{bi_lstm_forward.3} parent=15 // pred_region
          %s130 = sand.u32 %s40, 1
          %s131 = sand.u32 %s40, 1
          %s132 = smul.addr %s131, 8
          %s133 = scalar_lea.vmem [#allocation4], %s132
          %s134 = smul.u32 %s16, 2
          %s135 = ssub.s32 1, %s134
          %s136 = smul.u32 %s15, %s135
          %s137 = sadd.s32 %s16, %s136
          %s138 = smul.u32 4, %s137
          %s139 = smul.addr %s138, 2
          %s140 = sadd.s32 %s15, %s139
          %s141 = smul.addr %s140, 2
          %s142 = scalar_lea.vmem %s0, %s141
          // Predicated region
          $region21: #{bi_lstm_forward.3} parent=19 // pred_check
            _
          $region22: #{bi_lstm_forward.3} parent=19 // pred_check_branch
            %144 = sbr.rel (0) target = $region24
          $region23: #{bi_lstm_forward.3} parent=19 // pred_region
            // Predicated region
            $region25: #{bi_lstm_forward.3} parent=23 // pred_check
              _
            $region26: #{bi_lstm_forward.3} parent=23 // pred_check_branch
              %146 = sbr.rel target = $region28
            $region27: #{bi_lstm_forward.3} parent=23 // pred_region
              // Predicated region
              $region40: #{bi_lstm_forward.3} parent=27 // pred_check
                _
              $region41: #{bi_lstm_forward.3} parent=27 // pred_check_branch
                %167 = sbr.rel (0) target = $region43
              $region42: #{bi_lstm_forward.3} parent=27 // pred_region
                loop: start=0, step=1, limit=1
                $region44: #{bi_lstm_forward.3} parent=42 // loop_pre_header
                  _
                $region45: #{bi_lstm_forward.3} parent=42 // loop_header
                  %s169 = sphi 0, %s173
                  %p170 = scmp.ge.s32.totalorder %s169, 1
                  %s174 = sphi %s142, %s142
                  %s175 = sphi %s133, %s133
                $region46: #{bi_lstm_forward.3} parent=42 // loop_header_branch
                  %172 = sbr.rel (%p170) target = $region50
                $region47: #{bi_lstm_forward.3} parent=42 // loop_body
                  _
                $region48: #{bi_lstm_forward.3} parent=42 // loop_footer
                  %s173 = sadd.s32 1, %s169
                $region49: #{bi_lstm_forward.3} parent=42 // loop_footer_branch
                  %168 = sbr.rel target = $region45
                $region50: #{bi_lstm_forward.3} parent=42 // loop_exit
                  _
                loop: start=0, step=1, limit=1
                $region51: #{bi_lstm_forward.3} parent=42 // loop_pre_header
                  _
                $region52: #{bi_lstm_forward.3} parent=42 // loop_header
                  %s178 = sphi 0, %s182
                  %p179 = scmp.ge.s32.totalorder %s178, 1
                  %s183 = sphi %s142, %s142
                  %s184 = sphi %s133, %s133
                $region53: #{bi_lstm_forward.3} parent=42 // loop_header_branch
                  %181 = sbr.rel (%p179) target = $region57
                $region54: #{bi_lstm_forward.3} parent=42 // loop_body
                  %v185 = vld [vmem:[%s183] sm:$0x3]
                  %186 = vst [vmem:[%s184] sm:$0x3] %v185
                  %v187 = vld [vmem:[%s183 + $0x4] sm:$0x3]
                  %188 = vst [vmem:[%s184 + $0x2] sm:$0x3] %v187
                  %v189 = vld [vmem:[%s183 + $0x8] sm:$0x3]
                  %190 = vst [vmem:[%s184 + $0x4] sm:$0x3] %v189
                  %v191 = vld [vmem:[%s183 + $0xc] sm:$0x3]
                  %192 = vst [vmem:[%s184 + $0x6] sm:$0x3] %v191
                $region55: #{bi_lstm_forward.3} parent=42 // loop_footer
                  %s182 = sadd.s32 1, %s178
                $region56: #{bi_lstm_forward.3} parent=42 // loop_footer_branch
                  %177 = sbr.rel target = $region52
                $region57: #{bi_lstm_forward.3} parent=42 // loop_exit
                  _
              $region43: #{bi_lstm_forward.3} parent=27 // pred_fallthru
                _
            $region28: #{bi_lstm_forward.3} parent=23 // pred_fallthru
              _
            // Predicated region
            $region29: #{bi_lstm_forward.3} parent=23 // pred_check
              _
            $region30: #{bi_lstm_forward.3} parent=23 // pred_check_branch
              %148 = sbr.rel (0) target = $region32
            $region31: #{bi_lstm_forward.3} parent=23 // pred_region
              loop: start=0, step=1, limit=1
              $region33: #{bi_lstm_forward.3} parent=31 // loop_pre_header
                _
              $region34: #{bi_lstm_forward.3} parent=31 // loop_header
                %s151 = sphi 0, %s155
                %p152 = scmp.ge.s32.totalorder %s151, 1
                %s156 = sphi %s142, %s142
                %s157 = sphi %s133, %s133
              $region35: #{bi_lstm_forward.3} parent=31 // loop_header_branch
                %154 = sbr.rel (%p152) target = $region39
              $region36: #{bi_lstm_forward.3} parent=31 // loop_body
                %v158 = vld [vmem:[%s156] sm:$0x3]
                %159 = vst [vmem:[%s157] sm:$0x3] %v158
                %v160 = vld [vmem:[%s156 + $0x4] sm:$0x3]
                %161 = vst [vmem:[%s157 + $0x2] sm:$0x3] %v160
                %v162 = vld [vmem:[%s156 + $0x8] sm:$0x3]
                %163 = vst [vmem:[%s157 + $0x4] sm:$0x3] %v162
                %v164 = vld [vmem:[%s156 + $0xc] sm:$0x3]
                %165 = vst [vmem:[%s157 + $0x6] sm:$0x3] %v164
              $region37: #{bi_lstm_forward.3} parent=31 // loop_footer
                %s155 = sadd.s32 1, %s151
              $region38: #{bi_lstm_forward.3} parent=31 // loop_footer_branch
                %150 = sbr.rel target = $region34
              $region39: #{bi_lstm_forward.3} parent=31 // loop_exit
                _
            $region32: #{bi_lstm_forward.3} parent=23 // pred_fallthru
              _
          $region24: #{bi_lstm_forward.3} parent=19 // pred_fallthru
            _
          %193 = vnop
        $region20: #{bi_lstm_forward.3} parent=15 // pred_fallthru
          _
        // Predicated region
        $region58: #{bi_lstm_forward.3} parent=15 // pred_check
          %p194 = pneg %p76
        $region59: #{bi_lstm_forward.3} parent=15 // pred_check_branch
          %196 = sbr.rel (%p194) target = $region61
        $region60: #{bi_lstm_forward.3} parent=15 // pred_region
          %p197 = scmp.lt.s32.totalorder %s15, 1
          %s198 = scalar_select %p197, %s15, 1
          %s199 = smul.addr %s198, 4
          %s200 = smul.addr %s199, 4
          %s201 = scalar_lea.vmem %s1, %s200
        $region61: #{bi_lstm_forward.3} parent=15 // pred_fallthru
          _
      $region16: #{bi_lstm_forward.3} parent=5 // pred_fallthru
        _
      %p202 = scmp.le.s32.totalorder 1, %s8
      %p203 = scmp.lt.s32.totalorder %s8, 5
      %p204 = pnand %p202, %p203
      %p205 = pneg %p204
      // Predicated region
      $region62: #{bi_lstm_forward.3} parent=5 // pred_check
        _
      $region63: #{bi_lstm_forward.3} parent=5 // pred_check_branch
        %207 = sbr.rel (%p204) target = $region65
      $region64: #{bi_lstm_forward.3} parent=5 // pred_region
        %s208 = ssub.s32 %s8, 1
        %s209 = sand.u32 %s43, 1
        %s210 = sand.u32 %s43, 1
        %s211 = smul.addr %s210, 8
        %s212 = scalar_lea.vmem [#allocation4], %s211
        // Predicated region
        $region66: #{bi_lstm_forward.3} parent=64 // pred_check
          %p213 = pneg %p56
        $region67: #{bi_lstm_forward.3} parent=64 // pred_check_branch
          %215 = sbr.rel (%p213) target = $region69
        $region68: #{bi_lstm_forward.3} parent=64 // pred_region
          _
        $region69: #{bi_lstm_forward.3} parent=64 // pred_fallthru
          _
        %s216 = sand.u32 %s43, 1
        %s217 = sand.u32 %s43, 1
        %s218 = smul.addr %s217, 8
        %s219 = scalar_lea.vmem [#allocation4], %s218
        %p220 = pneg %p56
        %p221 = pneg %p53
        %p222 = scmp.lt.s32.totalorder %s17, 1
        %s223 = scalar_select %p222, %s17, 1
        %s224 = smul.addr %s223, 4
        %s225 = smul.addr %s224, 4
        %s226 = scalar_lea.vmem %s1, %s225
        %p227 = pneg %p82
        %p228 = pneg %p79
        %p229 = pneg %p108
        %p230 = pneg %p105
        %p231 = scmp.lt.s32.totalorder %s17, 1
        %s232 = scalar_select %p231, %s17, 1
        %s233 = smul.addr %s232, 2
        %s234 = scalar_lea.vmem %s2, %s233
        %s235 = smul.u32 %s18, 2
        %s236 = ssub.s32 1, %s235
        %s237 = smul.u32 %s17, %s236
        %s238 = sadd.s32 %s18, %s237
        %s239 = smul.u32 4, %s238
        %p240 = scmp.lt.s32.totalorder %s17, 1
        %s241 = scalar_select %p240, %s17, 1
        %s242 = smul.addr %s241, 4
        %s243 = smul.addr %s242, 4
        %s244 = scalar_lea.vmem %s1, %s243
        %p245 = scmp.lt.s32.totalorder %s17, 1
        %s246 = scalar_select %p245, %s17, 1
        %s247 = smul.addr %s246, 2
        %s248 = scalar_lea.vmem %s2, %s247
        %p250 = scmp.eq.s32.totalorder %s18, 0
        // Predicated region
        $region70: #{bi_lstm_forward.3} parent=64 // pred_check
          %p251 = pneg %p250
        $region71: #{bi_lstm_forward.3} parent=64 // pred_check_branch
          %253 = sbr.rel (%p251) target = $region73
        $region72: #{bi_lstm_forward.3} parent=64 // pred_region
          %vm254 = vcmask 254976
          %255 = vst.msk [vmem:[#allocation2] sm:$0x3] %vm254, 0.0
          %256 = vst.msk [vmem:[#allocation3] sm:$0x3] %vm254, 0.0
        $region73: #{bi_lstm_forward.3} parent=64 // pred_fallthru
          _
        %v257 = vld [vmem:[%s244] sm:$0xf]
        %v258 = vld [vmem:[%s244 + $0x4] sm:$0xf]
        %v259 = vld [vmem:[%s244 + $0x8] sm:$0xf]
        %v260 = vld [vmem:[%s244 + $0xc] sm:$0xf]
        %v261 = vld [vmem:[#allocation2] sm:$0x3]
        %v262 = vld [vmem:[#allocation3] sm:$0x3]
        %s263 = smul.u32 %s17, 3
        %s264 = smul.u32 %s263, 2
        %s265 = scalar_lea.vmem %s212, %s264 [#allocation4]
        %v266 = vld [vmem:[%s265] sm:$0x3]
        %v267 = vpack.c.bf16 %v261, %v261
        %v272 = vunpack.c.l.b16 %v257
        %v273 = vunpack.c.l.b16 %v258
        %v274 = vunpack.c.l.b16 %v259
        %v275 = vunpack.c.l.b16 %v260
        %v276 = vpack.c.b16 %v273, %v272
        %v277 = vpack.c.b16 %v275, %v274
        %vm280 = vcmask 261120
        %v282 = vsel %vm280, %v267, 0
        %284 = vmatprep.subr.bf16.mxu0 0
        %285 = vmatpush1.bf16.msra.mxu0 %v276
        %286 = vmatprep.subr.bf16.mxu0 0
        %287 = vmatpush1.bf16.msra.mxu0 %v277
        %288 = vmatprep.subr.bf16.mxu0 0
        %289 = vmatpush1.bf16.msra.mxu0 0
        %290 = vmatprep.subr.bf16.mxu0 0
        %291 = vmatpush1.bf16.msra.mxu0 0
        %292 = vmatprep.subr.bf16.mxu0 0
        %293 = vmatpush1.bf16.msra.mxu0 0
        %294 = vmatprep.subr.bf16.mxu0 0
        %295 = vmatpush1.bf16.msra.mxu0 0
        %296 = vmatprep.subr.bf16.mxu0 0
        %297 = vmatpush1.bf16.msra.mxu0 0
        %298 = vmatprep.subr.bf16.mxu0 0
        %299 = vmatpush1.bf16.msra.mxu0 0
        %300 = vmatprep.subr.bf16.mxu0 0
        %301 = vmatpush1.bf16.msra.mxu0 0
        %302 = vmatprep.subr.bf16.mxu0 0
        %303 = vmatpush1.bf16.msra.mxu0 0
        %304 = vmatprep.subr.bf16.mxu0 0
        %305 = vmatpush1.bf16.msra.mxu0 0
        %306 = vmatprep.subr.bf16.mxu0 0
        %307 = vmatpush1.bf16.msra.mxu0 0
        %308 = vmatprep.subr.bf16.mxu0 0
        %309 = vmatpush1.bf16.msra.mxu0 0
        %310 = vmatprep.subr.bf16.mxu0 0
        %311 = vmatpush1.bf16.msra.mxu0 0
        %312 = vmatprep.subr.bf16.mxu0 0
        %313 = vmatpush1.bf16.msra.mxu0 0
        %314 = vmatprep.subr.bf16.mxu0 0
        %315 = vmatpush1.bf16.msra.mxu0 0
        %316 = vmatprep.mubr.bf16.mxu0 0
        %317 = vmatmul.mubr.bf16.gmra.mrb[0].mxu0 %v282
        %v318 = vpop.f32.mrb[0].mxu0
        %v319 = vadd.f32 0.0, %v318
        %v320 = vpop.f32.mrb[0].mxu0
        %v321 = vpop.f32.mrb[0].mxu0
        %v322 = vpop.f32.mrb[0].mxu0
        %323 = vdwg.mxu0
        %v324 = vadd.f32 %v266, %v319
        %v325 = vxor.u32 %v324, 2147483648
        %v326 = vmul.f32 %v325, 1.442695
        %v327 = vpow.pop %v326
        %v328 = vadd.f32 %v327, 1.0
        %v329 = vrcp.pop %v328
        %v330 = vmul.f32 1.0, %v329
        %v331 = vtanh.pop %v324
        %333 = vrot.lane.b32.xlu0 %v262, 32
        %v334 = vpop.permute.xlu0 %333
        %v336 = vmul.f32 %v330, %v334
        %338 = vrot.lane.b32.xlu0 %v331, 64
        %v339 = vpop.permute.xlu0 %338
        %v341 = vmul.f32 %v330, %v339
        %343 = vrot.lane.b32.xlu0 %v341, 32
        %v344 = vpop.permute.xlu0 %343
        %v346 = vadd.f32 %v336, %v344
        %v347 = vtanh.pop %v346
        %349 = vrot.lane.b32.xlu0 %v347, 64
        %v350 = vpop.permute.xlu0 %349
        %v352 = vmul.f32 %v330, %v350
        %s353 = sadd.s32 %s17, 1
        %s354 = smul.u32 %s353, 2
        %s355 = scalar_lea.vmem %s212, %s354 [#allocation4]
        %v356 = vld [vmem:[%s355] sm:$0x3]
        %v357 = vpack.c.bf16 %v352, %v352
        %359 = vrot.lane.b32.xlu0 %v357, 32
        %v360 = vpop.permute.xlu0 %359
        %v362 = vsel %vm280, %v360, 0
        %364 = vmatprep.subr.bf16.mxu0 0
        %365 = vmatpush1.bf16.msra.mxu0 %v276
        %366 = vmatprep.subr.bf16.mxu0 0
        %367 = vmatpush1.bf16.msra.mxu0 %v277
        %368 = vmatprep.subr.bf16.mxu0 0
        %369 = vmatpush1.bf16.msra.mxu0 0
        %370 = vmatprep.subr.bf16.mxu0 0
        %371 = vmatpush1.bf16.msra.mxu0 0
        %372 = vmatprep.subr.bf16.mxu0 0
        %373 = vmatpush1.bf16.msra.mxu0 0
        %374 = vmatprep.subr.bf16.mxu0 0
        %375 = vmatpush1.bf16.msra.mxu0 0
        %376 = vmatprep.subr.bf16.mxu0 0
        %377 = vmatpush1.bf16.msra.mxu0 0
        %378 = vmatprep.subr.bf16.mxu0 0
        %379 = vmatpush1.bf16.msra.mxu0 0
        %380 = vmatprep.subr.bf16.mxu0 0
        %381 = vmatpush1.bf16.msra.mxu0 0
        %382 = vmatprep.subr.bf16.mxu0 0
        %383 = vmatpush1.bf16.msra.mxu0 0
        %384 = vmatprep.subr.bf16.mxu0 0
        %385 = vmatpush1.bf16.msra.mxu0 0
        %386 = vmatprep.subr.bf16.mxu0 0
        %387 = vmatpush1.bf16.msra.mxu0 0
        %388 = vmatprep.subr.bf16.mxu0 0
        %389 = vmatpush1.bf16.msra.mxu0 0
        %390 = vmatprep.subr.bf16.mxu0 0
        %391 = vmatpush1.bf16.msra.mxu0 0
        %392 = vmatprep.subr.bf16.mxu0 0
        %393 = vmatpush1.bf16.msra.mxu0 0
        %394 = vmatprep.subr.bf16.mxu0 0
        %395 = vmatpush1.bf16.msra.mxu0 0
        %396 = vmatprep.mubr.bf16.mxu0 0
        %397 = vmatmul.mubr.bf16.gmra.mrb[0].mxu0 %v362
        %v398 = vpop.f32.mrb[0].mxu0
        %v399 = vadd.f32 0.0, %v398
        %v400 = vpop.f32.mrb[0].mxu0
        %v401 = vpop.f32.mrb[0].mxu0
        %v402 = vpop.f32.mrb[0].mxu0
        %403 = vdwg.mxu0
        %v404 = vadd.f32 %v356, %v399
        %v405 = vxor.u32 %v404, 2147483648
        %v406 = vmul.f32 %v405, 1.442695
        %v407 = vpow.pop %v406
        %v408 = vadd.f32 %v407, 1.0
        %v409 = vrcp.pop %v408
        %v410 = vmul.f32 1.0, %v409
        %v411 = vtanh.pop %v404
        %v412 = vmul.f32 %v410, %v346
        %414 = vrot.lane.b32.xlu0 %v411, 64
        %v415 = vpop.permute.xlu0 %414
        %v417 = vmul.f32 %v410, %v415
        %419 = vrot.lane.b32.xlu0 %v417, 32
        %v420 = vpop.permute.xlu0 %419
        %v422 = vadd.f32 %v412, %v420
        %v423 = vtanh.pop %v422
        %425 = vrot.lane.b32.xlu0 %v423, 64
        %v426 = vpop.permute.xlu0 %425
        %v428 = vmul.f32 %v410, %v426
        %s429 = ssub.s32 2, %s17
        %s430 = smul.u32 %s429, 2
        %s431 = scalar_lea.vmem %s212, %s430 [#allocation4]
        %v432 = vld [vmem:[%s431] sm:$0x3]
        %v433 = vpack.c.bf16 %v428, %v428
        %435 = vrot.lane.b32.xlu0 %v433, 32
        %v436 = vpop.permute.xlu0 %435
        %v438 = vsel %vm280, %v436, 0
        %440 = vmatprep.subr.bf16.mxu0 0
        %441 = vmatpush1.bf16.msra.mxu0 %v276
        %442 = vmatprep.subr.bf16.mxu0 0
        %443 = vmatpush1.bf16.msra.mxu0 %v277
        %444 = vmatprep.subr.bf16.mxu0 0
        %445 = vmatpush1.bf16.msra.mxu0 0
        %446 = vmatprep.subr.bf16.mxu0 0
        %447 = vmatpush1.bf16.msra.mxu0 0
        %448 = vmatprep.subr.bf16.mxu0 0
        %449 = vmatpush1.bf16.msra.mxu0 0
        %450 = vmatprep.subr.bf16.mxu0 0
        %451 = vmatpush1.bf16.msra.mxu0 0
        %452 = vmatprep.subr.bf16.mxu0 0
        %453 = vmatpush1.bf16.msra.mxu0 0
        %454 = vmatprep.subr.bf16.mxu0 0
        %455 = vmatpush1.bf16.msra.mxu0 0
        %456 = vmatprep.subr.bf16.mxu0 0
        %457 = vmatpush1.bf16.msra.mxu0 0
        %458 = vmatprep.subr.bf16.mxu0 0
        %459 = vmatpush1.bf16.msra.mxu0 0
        %460 = vmatprep.subr.bf16.mxu0 0
        %461 = vmatpush1.bf16.msra.mxu0 0
        %462 = vmatprep.subr.bf16.mxu0 0
        %463 = vmatpush1.bf16.msra.mxu0 0
        %464 = vmatprep.subr.bf16.mxu0 0
        %465 = vmatpush1.bf16.msra.mxu0 0
        %466 = vmatprep.subr.bf16.mxu0 0
        %467 = vmatpush1.bf16.msra.mxu0 0
        %468 = vmatprep.subr.bf16.mxu0 0
        %469 = vmatpush1.bf16.msra.mxu0 0
        %470 = vmatprep.subr.bf16.mxu0 0
        %471 = vmatpush1.bf16.msra.mxu0 0
        %472 = vmatprep.mubr.bf16.mxu0 0
        %473 = vmatmul.mubr.bf16.gmra.mrb[0].mxu0 %v438
        %v474 = vpop.f32.mrb[0].mxu0
        %v475 = vadd.f32 0.0, %v474
        %v476 = vpop.f32.mrb[0].mxu0
        %v477 = vpop.f32.mrb[0].mxu0
        %v478 = vpop.f32.mrb[0].mxu0
        %479 = vdwg.mxu0
        %v480 = vadd.f32 %v432, %v475
        %v481 = vxor.u32 %v480, 2147483648
        %v482 = vmul.f32 %v481, 1.442695
        %v483 = vpow.pop %v482
        %v484 = vadd.f32 %v483, 1.0
        %v485 = vrcp.pop %v484
        %v486 = vmul.f32 1.0, %v485
        %v487 = vtanh.pop %v480
        %v488 = vmul.f32 %v486, %v422
        %490 = vrot.lane.b32.xlu0 %v487, 64
        %v491 = vpop.permute.xlu0 %490
        %v493 = vmul.f32 %v486, %v491
        %495 = vrot.lane.b32.xlu0 %v493, 32
        %v496 = vpop.permute.xlu0 %495
        %v498 = vadd.f32 %v488, %v496
        %v499 = vtanh.pop %v498
        %501 = vrot.lane.b32.xlu0 %v499, 64
        %v502 = vpop.permute.xlu0 %501
        %v504 = vmul.f32 %v486, %v502
        %s505 = smul.u32 %s17, 4294967293
        %s506 = sadd.s32 %s505, 3
        %s507 = smul.u32 %s506, 2
        %s508 = scalar_lea.vmem %s212, %s507 [#allocation4]
        %v509 = vld [vmem:[%s508] sm:$0x3]
        %v510 = vpack.c.bf16 %v504, %v504
        %512 = vrot.lane.b32.xlu0 %v510, 32
        %v513 = vpop.permute.xlu0 %512
        %v515 = vsel %vm280, %v513, 0
        %517 = vmatprep.subr.bf16.mxu0 0
        %518 = vmatpush1.bf16.msra.mxu0 %v276
        %519 = vmatprep.subr.bf16.mxu0 0
        %520 = vmatpush1.bf16.msra.mxu0 %v277
        %521 = vmatprep.subr.bf16.mxu0 0
        %522 = vmatpush1.bf16.msra.mxu0 0
        %523 = vmatprep.subr.bf16.mxu0 0
        %524 = vmatpush1.bf16.msra.mxu0 0
        %525 = vmatprep.subr.bf16.mxu0 0
        %526 = vmatpush1.bf16.msra.mxu0 0
        %527 = vmatprep.subr.bf16.mxu0 0
        %528 = vmatpush1.bf16.msra.mxu0 0
        %529 = vmatprep.subr.bf16.mxu0 0
        %530 = vmatpush1.bf16.msra.mxu0 0
        %531 = vmatprep.subr.bf16.mxu0 0
        %532 = vmatpush1.bf16.msra.mxu0 0
        %533 = vmatprep.subr.bf16.mxu0 0
        %534 = vmatpush1.bf16.msra.mxu0 0
        %535 = vmatprep.subr.bf16.mxu0 0
        %536 = vmatpush1.bf16.msra.mxu0 0
        %537 = vmatprep.subr.bf16.mxu0 0
        %538 = vmatpush1.bf16.msra.mxu0 0
        %539 = vmatprep.subr.bf16.mxu0 0
        %540 = vmatpush1.bf16.msra.mxu0 0
        %541 = vmatprep.subr.bf16.mxu0 0
        %542 = vmatpush1.bf16.msra.mxu0 0
        %543 = vmatprep.subr.bf16.mxu0 0
        %544 = vmatpush1.bf16.msra.mxu0 0
        %545 = vmatprep.subr.bf16.mxu0 0
        %546 = vmatpush1.bf16.msra.mxu0 0
        %547 = vmatprep.subr.bf16.mxu0 0
        %548 = vmatpush1.bf16.msra.mxu0 0
        %549 = vmatprep.mubr.bf16.mxu0 0
        %550 = vmatmul.mubr.bf16.gmra.mrb[0].mxu0 %v515
        %v551 = vpop.f32.mrb[0].mxu0
        %v552 = vadd.f32 0.0, %v551
        %v553 = vpop.f32.mrb[0].mxu0
        %v554 = vpop.f32.mrb[0].mxu0
        %v555 = vpop.f32.mrb[0].mxu0
        %556 = vdwg.mxu0
        %v557 = vadd.f32 %v509, %v552
        %v558 = vxor.u32 %v557, 2147483648
        %v559 = vmul.f32 %v558, 1.442695
        %v560 = vpow.pop %v559
        %v561 = vadd.f32 %v560, 1.0
        %v562 = vrcp.pop %v561
        %v563 = vmul.f32 1.0, %v562
        %v564 = vtanh.pop %v557
        %v565 = vmul.f32 %v563, %v498
        %567 = vrot.lane.b32.xlu0 %v564, 64
        %v568 = vpop.permute.xlu0 %567
        %v570 = vmul.f32 %v563, %v568
        %572 = vrot.lane.b32.xlu0 %v570, 32
        %v573 = vpop.permute.xlu0 %572
        %v575 = vadd.f32 %v565, %v573
        %v576 = vtanh.pop %v575
        %578 = vrot.lane.b32.xlu0 %v576, 64
        %v579 = vpop.permute.xlu0 %578
        %v581 = vmul.f32 %v563, %v579
        %583 = vrot.lane.b32.xlu0 %v581, 32
        %v584 = vpop.permute.xlu0 %583
        %vm586 = vcmask 254976
        %587 = vst.msk [vmem:[#allocation2] sm:$0x3] %vm586, %v584
        %589 = vrot.lane.b32.xlu0 %v575, 96
        %v590 = vpop.permute.xlu0 %589
        %592 = vst.msk [vmem:[#allocation3] sm:$0x3] %vm586, %v590
        %p593 = scmp.eq.s32.totalorder %s18, 1
        // Predicated region
        $region74: #{bi_lstm_forward.3} parent=64 // pred_check
          %p594 = pneg %p593
        $region75: #{bi_lstm_forward.3} parent=64 // pred_check_branch
          %596 = sbr.rel (%p594) target = $region77
        $region76: #{bi_lstm_forward.3} parent=64 // pred_region
          %597 = vst.msk [vmem:[%s248] sm:$0x3] %vm586, %v584
        $region77: #{bi_lstm_forward.3} parent=64 // pred_fallthru
          _
        %p598 = scmp.lt.s32.totalorder %s17, 1
        %s599 = scalar_select %p598, %s17, 1
        %s600 = smul.addr %s599, 2
        %s601 = scalar_lea.vmem %s2, %s600
        // Predicated region
        $region78: #{bi_lstm_forward.3} parent=64 // pred_check
          %p602 = pneg %p105
        $region79: #{bi_lstm_forward.3} parent=64 // pred_check_branch
          %604 = sbr.rel (%p602) target = $region81
        $region80: #{bi_lstm_forward.3} parent=64 // pred_region
          _
        $region81: #{bi_lstm_forward.3} parent=64 // pred_fallthru
          _
      $region65: #{bi_lstm_forward.3} parent=5 // pred_fallthru
        _
      %p605 = scmp.le.s32.totalorder 2, %s8
      // Predicated region
      $region82: #{bi_lstm_forward.3} parent=5 // pred_check
        %p606 = pneg %p605
      $region83: #{bi_lstm_forward.3} parent=5 // pred_check_branch
        %608 = sbr.rel (%p606) target = $region85
      $region84: #{bi_lstm_forward.3} parent=5 // pred_region
        %s609 = ssub.s32 %s8, 2
        // Predicated region
        $region86: #{bi_lstm_forward.3} parent=84 // pred_check
          %p610 = pneg %p111
        $region87: #{bi_lstm_forward.3} parent=84 // pred_check_branch
          %612 = sbr.rel (%p610) target = $region89
        $region88: #{bi_lstm_forward.3} parent=84 // pred_region
          %p613 = scmp.lt.s32.totalorder %s19, 1
          %s614 = scalar_select %p613, %s19, 1
          %s615 = smul.addr %s614, 2
          %s616 = scalar_lea.vmem %s2, %s615
        $region89: #{bi_lstm_forward.3} parent=84 // pred_fallthru
          _
      $region85: #{bi_lstm_forward.3} parent=5 // pred_fallthru
        _
    $region6: #{bi_lstm_forward.3} parent=1 // loop_footer
      %s12 = sadd.s32 1, %s8
    $region7: #{bi_lstm_forward.3} parent=1 // loop_footer_branch
      %7 = sbr.rel target = $region3
    $region8: #{bi_lstm_forward.3} parent=1 // loop_exit
      _

</llo_original>
